<compile_context>
chip_gen: v5e
topology: v5e:2x2
jax: 0.10.0
libtpu: 0.0.40
codegen_flags: <defaults>
</compile_context>

<pallas_src>
import jax
import jax.numpy as jnp
from jax import lax
from jax.experimental import pallas as pl
from jax.experimental.pallas import tpu as pltpu

# ---- model hyper-parameters (small, consistent with the PyTorch module) ----
B = 2                       # batch
C = 4                       # EEG channels
N = 128                     # time samples (AvgPool needs N >= 73)
NB_CLASSES = 4
NU = C                      # Nu defaults to C
NC = 20                     # Nc spatio-temporal kernels (default 20)
K2 = 12                     # conv2 temporal kernel length
T2 = N - K2 + 1             # conv2 'valid' output length        = 117
POOL_K = 62                 # AvgPool2d kernel (1, 62)
POOL_S = 12                 # AvgPool2d stride (1, 12)
W_OUT = (T2 - POOL_K) // POOL_S + 1        # pooled length       = 5
FEAT = NC * W_OUT                          # flattened features  = 100
BN_EPS = 1e-5               # nn.BatchNorm2d default eps

# ---- kernel-side padded sizes ----
T2P = 128                   # conv output length padded to one lane group
K_IM = K2 * C               # 48 im2col rows
K1 = K_IM + 1               # + ones row (bias folded into the matmul)
K1P = 56                    # contraction dim padded to a multiple of 8
NC_PAD = 24                 # Nc padded to a multiple of 8
LANES = 128
MAX_BATCH_TILE = 32         # samples per grid step (one conv matmul per step)
# MXU input dtype for the folded conv matmul.  Keep f32 for exact parity with
# the f32 reference; flip to jnp.bfloat16 on v6e/v7x for more MXU throughput.
MATMUL_DTYPE = jnp.float32


def sccnet_kernel(x_ref, w2_ref, pmat_ref, fcw_ref, ssum_ref, fcb_ref,
                  o_ref, sq_scr):
    """One grid step == one batch tile of `bt` samples.

    x_ref:   (K1P, bt*128)        im2col slab (+ ones row), time on lanes
    w2_ref:  (NC_PAD, K1P)        fused conv1∘bn1∘conv2∘bn2 (+bias column)
    pmat_ref:(128, W_OUT)         averaging-pool matrix (zero rows past T2)
    fcw_ref: (NB, bt*NC_PAD, W_OUT) fc weights tiled to match scratch rows
    ssum_ref:(bt, bt*NC_PAD)      per-sample block-sum matrix
    fcb_ref: (1, 128)             fc bias, lane-padded
    o_ref:   (bt, 128)            lane-dense logits (cols 0..NB-1 used)
    sq_scr:  (bt*NC_PAD, 128)     VMEM scratch, row = b*NC_PAD + c
    """
    bt = o_ref.shape[0]

    # 1) fused conv1∘bn1∘conv2∘bn2 (+bias via ones row): ONE matmul per tile.
    xs = x_ref[...]                                              # (K1P, bt*128)
    z = jnp.dot(w2_ref[...], xs,
                preferred_element_type=jnp.float32)              # (NC_PAD, bt*128)
    sq = z * z                                                   # x ** 2
    # TODO(synk): nn.Dropout(0.5) is identity at inference; no RNG mask.

    # 2) lane-group aligned scatter: (NC_PAD, bt*128) -> (bt*NC_PAD, 128).
    #    Each slice selects one 128-lane group (no cross-lane movement).
    for b in range(bt):
        sq_scr[pl.ds(b * NC_PAD, NC_PAD), :] = sq[:, b * T2P:(b + 1) * T2P]

    # 3) AvgPool2d((1,62),(1,12)) as a single matmul, then log.
    pooled = jnp.dot(sq_scr[...], pmat_ref[...],
                     preferred_element_type=jnp.float32)         # (bt*NC_PAD, W_OUT)
    logp = jnp.log(pooled)

    # 4) batched fc head: per-class lane reduce, class placed on its lane,
    #    then one block-sum matmul -> lane-dense (bt, 128) output.
    lane = lax.broadcasted_iota(jnp.int32, (1, LANES), 1)
    s128 = jnp.zeros((bt * NC_PAD, LANES), jnp.float32)
    for o in range(NB_CLASSES):
        s_o = jnp.sum(logp * fcw_ref[o], axis=1, keepdims=True)  # (bt*NC_PAD, 1)
        s128 = s128 + jnp.where(lane == o, s_o, 0.0)
    out = jnp.dot(ssum_ref[...], s128,
                  preferred_element_type=jnp.float32)            # (bt, 128)
    o_ref[...] = out + fcb_ref[...]


def _fold_params(p):
    """Fold conv1 -> bn1 -> conv2 -> bn2 (eval mode) into one affine map and
    build the pooling / fc operands in kernel-friendly, padded layouts."""
    hi = lax.Precision.HIGHEST
    # TODO(synk): BatchNorm folded with running statistics (eval mode only).
    s1 = p["bn1_g"] / jnp.sqrt(p["bn1_v"] + BN_EPS)                  # scalar
    a1 = s1 * p["conv1_w"][:, 0, :, 0]                               # (NU, C)
    c1 = s1 * p["conv1_b"] + p["bn1_b"] - s1 * p["bn1_m"]            # (NU,)

    s2 = p["bn2_g"] / jnp.sqrt(p["bn2_v"] + BN_EPS)                  # (NC,)
    a2 = s2[:, None, None] * p["conv2_w"][:, 0, :, :]                # (NC, NU, K2)
    c2 = s2 * p["conv2_b"] + p["bn2_b"] - s2 * p["bn2_m"]            # (NC,)

    # z[c, t] = sum_{k,e} w2f[c, k*C+e] * x[e, t+k] + b2f[c]
    w2f = jnp.einsum("cuk,ue->cke", a2, a1, precision=hi).reshape(NC, K_IM)
    b2f = jnp.einsum("cuk,u->c", a2, c1, precision=hi) + c2          # (NC,)

    # (NC_PAD, K1P): [weights | bias column | zero pad].  Padded channel rows
    # get bias 1 so their pooled value is exactly 1 -> log 0 -> zero fc term.
    w2aug = jnp.zeros((NC_PAD, K1P), jnp.float32)
    w2aug = w2aug.at[:NC, :K_IM].set(w2f)
    w2aug = w2aug.at[:NC, K_IM].set(b2f)
    w2aug = w2aug.at[NC:, K_IM].set(1.0)

    # AvgPool2d((1,62), stride (1,12)) as a (128, W_OUT) matmul; rows >= T2
    # (the time padding) never fall inside a window, so they stay zero.
    t_idx = jnp.arange(T2P)[:, None]
    w_idx = jnp.arange(W_OUT)[None, :]
    pmat = (((t_idx >= POOL_S * w_idx) & (t_idx < POOL_S * w_idx + POOL_K)
             & (t_idx < T2)).astype(jnp.float32) / POOL_K)           # (128, W_OUT)

    # torch Flatten of (Nc, 1, W_out) is c-major -> regroup fc weight to
    # (NB, NC, W_OUT), zero-pad channels to NC_PAD.
    fcw = p["fc_w"].reshape(NB_CLASSES, NC, W_OUT)
    fcw_pad = jnp.zeros((NB_CLASSES, NC_PAD, W_OUT), jnp.float32)
    fcw_pad = fcw_pad.at[:, :NC, :].set(fcw)
    fcb_pad = jnp.zeros((1, LANES), jnp.float32).at[0, :NB_CLASSES].set(p["fc_b"])
    return w2aug, pmat, fcw_pad, fcb_pad


def _build_slab(x2):
    """(bp, C, N) -> (K1P, bp*128) im2col slab with a ones row for the bias."""
    bp = x2.shape[0]
    taps = [x2[:, :, k:k + T2] for k in range(K2)]                   # (bp, C, T2)
    cols = jnp.concatenate(taps, axis=1)                             # row = k*C+e
    ones = jnp.ones((bp, 1, T2), x2.dtype)
    zpad = jnp.zeros((bp, K1P - K1, T2), x2.dtype)
    slab = jnp.concatenate([cols, ones, zpad], axis=1)               # (bp, K1P, T2)
    slab = jnp.pad(slab, ((0, 0), (0, 0), (0, T2P - T2)))            # (bp, K1P, 128)
    return slab.transpose(1, 0, 2).reshape(K1P, bp * T2P)            # (K1P, bp*128)


@jax.jit
def sccnet_forward(x, params):
    """x: (B, 1, C, N) float32 -> logits (B, NB_CLASSES)."""
    bsz = x.shape[0]
    x2 = x[:, 0, :, :].astype(jnp.float32)                           # (B, C, N)
    bt = min(bsz, MAX_BATCH_TILE)
    pad = (-bsz) % bt
    if pad:  # replicate sample 0 so padded rows stay finite (no log(0))
        x2 = jnp.concatenate([x2, jnp.broadcast_to(x2[:1], (pad, C, N))], axis=0)
    bp = x2.shape[0]
    n_tiles = bp // bt

    slab = _build_slab(x2).astype(MATMUL_DTYPE)                      # (K1P, bp*128)
    w2aug, pmat, fcw_pad, fcb_pad = _fold_params(params)
    w2aug = w2aug.astype(MATMUL_DTYPE)
    fcw_rep = jnp.tile(fcw_pad[:, None, :, :], (1, bt, 1, 1)).reshape(
        NB_CLASSES, bt * NC_PAD, W_OUT)                              # rows b*NC_PAD+c
    row_b = jnp.arange(bt)[:, None]
    col_b = (jnp.arange(bt * NC_PAD) // NC_PAD)[None, :]
    ssum = (row_b == col_b).astype(jnp.float32)                      # (bt, bt*NC_PAD)

    itemsize = jnp.dtype(MATMUL_DTYPE).itemsize
    flops = int(n_tiles * (2 * NC_PAD * K1P * bt * T2P
                           + 2 * bt * NC_PAD * T2P * W_OUT
                           + NB_CLASSES * 2 * bt * NC_PAD * W_OUT
                           + 2 * bt * bt * NC_PAD * LANES))
    bytes_acc = int(slab.size * itemsize
                    + n_tiles * (w2aug.size * itemsize + pmat.size * 4
                                 + fcw_rep.size * 4 + ssum.size * 4
                                 + fcb_pad.size * 4)
                    + bp * LANES * 4)
    cost = pl.CostEstimate(flops=flops,
                           transcendentals=int(bp * NC_PAD * W_OUT),
                           bytes_accessed=bytes_acc)

    out = pl.pallas_call(
        sccnet_kernel,
        out_shape=jax.ShapeDtypeStruct((bp, LANES), jnp.float32),
        grid=(n_tiles,),
        in_specs=[
            pl.BlockSpec((K1P, bt * T2P), lambda i: (0, i)),
            pl.BlockSpec(w2aug.shape, lambda i: (0, 0)),
            pl.BlockSpec(pmat.shape, lambda i: (0, 0)),
            pl.BlockSpec(fcw_rep.shape, lambda i: (0, 0, 0)),
            pl.BlockSpec(ssum.shape, lambda i: (0, 0)),
            pl.BlockSpec(fcb_pad.shape, lambda i: (0, 0)),
        ],
        out_specs=pl.BlockSpec((bt, LANES), lambda i: (i, 0)),
        scratch_shapes=[pltpu.VMEM((bt * NC_PAD, T2P), jnp.float32)],
        compiler_params=pltpu.CompilerParams(
            dimension_semantics=("parallel",)),
        cost_estimate=cost,
    )(slab, w2aug, pmat, fcw_rep, ssum, fcb_pad)
    return out[:bsz, :NB_CLASSES]


def init_params(key):
    ks = jax.random.split(key, 14)

    def rnd(k, shape, scale=0.1):
        return scale * jax.random.normal(k, shape, dtype=jnp.float32)

    p = {}
    p["conv1_w"] = rnd(ks[0], (NU, 1, C, 1))          # Conv2d(1, Nu, (C, 1))
    p["conv1_b"] = rnd(ks[1], (NU,))
    p["bn1_g"] = 1.0 + rnd(ks[2], ())                 # BatchNorm2d(1), eval stats
    p["bn1_b"] = rnd(ks[3], ())
    p["bn1_m"] = rnd(ks[4], ())
    p["bn1_v"] = 1.0 + 0.1 * jnp.abs(jax.random.normal(ks[5], (), dtype=jnp.float32))
    p["conv2_w"] = rnd(ks[6], (NC, 1, NU, K2))        # Conv2d(1, Nc, (Nu, 12))
    p["conv2_b"] = rnd(ks[7], (NC,))
    p["bn2_g"] = 1.0 + rnd(ks[8], (NC,))              # BatchNorm2d(Nc), eval stats
    p["bn2_b"] = rnd(ks[9], (NC,))
    p["bn2_m"] = rnd(ks[10], (NC,))
    p["bn2_v"] = 1.0 + 0.1 * jnp.abs(jax.random.normal(ks[11], (NC,), dtype=jnp.float32))
    p["fc_w"] = rnd(ks[12], (NB_CLASSES, FEAT))       # Linear(feature_dim, nb_classes)
    p["fc_b"] = rnd(ks[13], (NB_CLASSES,))
    return p


def reference_forward(x, p):
    """Pure-JAX reference with an independent conv / pool implementation."""
    hi = lax.Precision.HIGHEST
    xb = x[:, 0]                                                      # (B, C, N)
    # conv1: Conv2d(1, Nu, (C, 1)) -> (B, Nu, 1, N); permute -> (B, 1, Nu, N)
    h = (jnp.einsum("uc,bcn->bun", p["conv1_w"][:, 0, :, 0], xb, precision=hi)
         + p["conv1_b"][None, :, None])
    # BatchNorm2d(1), eval mode
    s1 = p["bn1_g"] / jnp.sqrt(p["bn1_v"] + BN_EPS)
    h = (h - p["bn1_m"]) * s1 + p["bn1_b"]
    # conv2: Conv2d(1, Nc, (Nu, 12)), 'valid' padding
    z = lax.conv_general_dilated(h[:, None], p["conv2_w"], (1, 1), "VALID",
                                 dimension_numbers=("NCHW", "OIHW", "NCHW"),
                                 precision=hi)
    z = z[:, :, 0, :] + p["conv2_b"][None, :, None]                   # (B, NC, T2)
    # BatchNorm2d(Nc), eval mode
    s2 = p["bn2_g"] / jnp.sqrt(p["bn2_v"] + BN_EPS)
    z = (z - p["bn2_m"][None, :, None]) * s2[None, :, None] + p["bn2_b"][None, :, None]
    z = z ** 2
    pooled = jnp.stack([z[:, :, POOL_S * w:POOL_S * w + POOL_K].mean(-1)
                        for w in range(W_OUT)], axis=-1)              # (B, NC, W_OUT)
    feat = jnp.log(pooled).reshape(x.shape[0], FEAT)                  # torch Flatten
    return jnp.dot(feat, p["fc_w"].T, precision=hi) + p["fc_b"]


if __name__ == "__main__":
    key = jax.random.PRNGKey(0)
    kp, kx = jax.random.split(key)
    params = init_params(kp)
    x = jax.random.normal(kx, (B, 1, C, N), dtype=jnp.float32)

    out = jax.block_until_ready(sccnet_forward(x, params))
    ref = reference_forward(x, params)

    assert out.shape == (B, NB_CLASSES)
    assert jnp.allclose(out, ref, atol=5e-3, rtol=5e-3), (out, ref)
    print("KERNEL_OK")
</pallas_src>

<mosaic_0001>
module attributes {stable_mosaic.version = 11 : i64} {
  func.func @sccnet_kernel(%arg0: i32, %arg1: memref<56x256xf32, #tpu.memory_space<vmem>>, %arg2: memref<24x56xf32, #tpu.memory_space<vmem>>, %arg3: memref<128x5xf32, #tpu.memory_space<vmem>>, %arg4: memref<4x48x5xf32, #tpu.memory_space<vmem>>, %arg5: memref<2x48xf32, #tpu.memory_space<vmem>>, %arg6: memref<1x128xf32, #tpu.memory_space<vmem>>, %arg7: memref<2x128xf32, #tpu.memory_space<vmem>>, %arg8: memref<48x128xf32, #tpu.memory_space<vmem>>) attributes {dimension_semantics = [#tpu.dimension_semantics<parallel>], iteration_bounds = array<i64: 1>, scalar_prefetch = 0 : i64, scratch_operands = 1 : i64, tpu.core_type = #tpu.core_type<tc>, window_params = [{transform_indices = @transform_0, window_bounds = array<i64: 56, 256>}, {pipeline_mode = #tpu.pipeline_mode<synchronous>, transform_indices = @transform_1, window_bounds = array<i64: 24, 56>}, {pipeline_mode = #tpu.pipeline_mode<synchronous>, transform_indices = @transform_2, window_bounds = array<i64: 128, 5>}, {pipeline_mode = #tpu.pipeline_mode<synchronous>, transform_indices = @transform_3, window_bounds = array<i64: 4, 48, 5>}, {pipeline_mode = #tpu.pipeline_mode<synchronous>, transform_indices = @transform_4, window_bounds = array<i64: 2, 48>}, {pipeline_mode = #tpu.pipeline_mode<synchronous>, transform_indices = @transform_5, window_bounds = array<i64: 1, 128>}, {transform_indices = @transform_6, window_bounds = array<i64: 2, 128>}]} {
    %c0 = arith.constant 0 : index
    %c0_0 = arith.constant 0 : index
    %0 = vector.load %arg1[%c0, %c0_0] : memref<56x256xf32, #tpu.memory_space<vmem>>, vector<56x256xf32>
    %c0_1 = arith.constant 0 : index
    %c0_2 = arith.constant 0 : index
    %1 = vector.load %arg2[%c0_1, %c0_2] : memref<24x56xf32, #tpu.memory_space<vmem>>, vector<24x56xf32>
    %cst = arith.constant dense<0.000000e+00> : vector<24x256xf32>
    %2 = tpu.matmul %1, %0, %cst {dimension_numbers = #tpu.dot_dimension_numbers<[1], [0], [0], [1], [0, 0, 1, 1], [], []>} : vector<24x56xf32>, vector<56x256xf32>, vector<24x256xf32> -> vector<24x256xf32>
    %3 = arith.mulf %2, %2 : vector<24x256xf32>
    %4 = vector.extract_strided_slice %3 {offsets = [0, 0], sizes = [24, 128], strides = [1, 1]} : vector<24x256xf32> to vector<24x128xf32>
    %c0_3 = arith.constant 0 : index
    %c0_4 = arith.constant 0 : index
    %5 = vector.load %arg8[%c0_3, %c0_4] : memref<48x128xf32, #tpu.memory_space<vmem>>, vector<24x128xf32>
    tpu.vector_store %arg8[%c0_3, %c0_4], %4 {strides = array<i32>} : memref<48x128xf32, #tpu.memory_space<vmem>>, vector<24x128xf32>,
    %6 = vector.extract_strided_slice %3 {offsets = [0, 128], sizes = [24, 128], strides = [1, 1]} : vector<24x256xf32> to vector<24x128xf32>
    %c24 = arith.constant 24 : index
    %c0_5 = arith.constant 0 : index
    %7 = vector.load %arg8[%c24, %c0_5] : memref<48x128xf32, #tpu.memory_space<vmem>>, vector<24x128xf32>
    tpu.vector_store %arg8[%c24, %c0_5], %6 {strides = array<i32>} : memref<48x128xf32, #tpu.memory_space<vmem>>, vector<24x128xf32>,
    %c0_6 = arith.constant 0 : index
    %c0_7 = arith.constant 0 : index
    %8 = vector.load %arg8[%c0_6, %c0_7] : memref<48x128xf32, #tpu.memory_space<vmem>>, vector<48x128xf32>
    %c0_8 = arith.constant 0 : index
    %c0_9 = arith.constant 0 : index
    %9 = vector.load %arg3[%c0_8, %c0_9] : memref<128x5xf32, #tpu.memory_space<vmem>>, vector<128x5xf32>
    %cst_10 = arith.constant dense<0.000000e+00> : vector<48x5xf32>
    %10 = tpu.matmul %8, %9, %cst_10 {dimension_numbers = #tpu.dot_dimension_numbers<[1], [0], [0], [1], [0, 0, 1, 1], [], []>} : vector<48x128xf32>, vector<128x5xf32>, vector<48x5xf32> -> vector<48x5xf32>
    %11 = math.log %10 : vector<48x5xf32>
    %12 = tpu.iota {dimensions = array<i32: 1>} : vector<1x128xi32>
    %cst_11 = arith.constant 0.000000e+00 : f32
    %13 = vector.broadcast %cst_11 : f32 to vector<48x128xf32>
    %c0_12 = arith.constant 0 : index
    %c0_13 = arith.constant 0 : index
    %c0_14 = arith.constant 0 : index
    %14 = vector.load %arg4[%c0_12, %c0_13, %c0_14] : memref<4x48x5xf32, #tpu.memory_space<vmem>>, vector<1x48x5xf32>
    %15 = vector.shape_cast %14 : vector<1x48x5xf32> to vector<48x5xf32>
    %16 = arith.mulf %11, %15 : vector<48x5xf32>
    %cst_15 = arith.constant dense<0.000000e+00> : vector<48xf32>
    %17 = vector.multi_reduction <add>, %16, %cst_15 [1] : vector<48x5xf32> to vector<48xf32>
    %18 = vector.shape_cast %17 : vector<48xf32> to vector<48x1xf32>
    %c0_i32 = arith.constant 0 : i32
    %19 = vector.broadcast %c0_i32 : i32 to vector<1x128xi32>
    %20 = arith.cmpi eq, %12, %19 : vector<1x128xi32>
    %cst_16 = arith.constant 0.000000e+00 : f32
    %21 = vector.shape_cast %20 : vector<1x128xi1> to vector<1x128xi1>
    %22 = vector.broadcast %21 : vector<1x128xi1> to vector<48x128xi1>
    %23 = vector.shape_cast %18 : vector<48x1xf32> to vector<48x1xf32>
    %24 = vector.broadcast %23 : vector<48x1xf32> to vector<48x128xf32>
    %25 = vector.broadcast %cst_16 : f32 to vector<48x128xf32>
    %26 = arith.select %22, %24, %25 : vector<48x128xi1>, vector<48x128xf32>
    %27 = arith.addf %13, %26 : vector<48x128xf32>
    %c1 = arith.constant 1 : index
    %c0_17 = arith.constant 0 : index
    %c0_18 = arith.constant 0 : index
    %28 = vector.load %arg4[%c1, %c0_17, %c0_18] : memref<4x48x5xf32, #tpu.memory_space<vmem>>, vector<1x48x5xf32>
    %29 = vector.shape_cast %28 : vector<1x48x5xf32> to vector<48x5xf32>
    %30 = arith.mulf %11, %29 : vector<48x5xf32>
    %cst_19 = arith.constant dense<0.000000e+00> : vector<48xf32>
    %31 = vector.multi_reduction <add>, %30, %cst_19 [1] : vector<48x5xf32> to vector<48xf32>
    %32 = vector.shape_cast %31 : vector<48xf32> to vector<48x1xf32>
    %c1_i32 = arith.constant 1 : i32
    %33 = vector.broadcast %c1_i32 : i32 to vector<1x128xi32>
    %34 = arith.cmpi eq, %12, %33 : vector<1x128xi32>
    %cst_20 = arith.constant 0.000000e+00 : f32
    %35 = vector.shape_cast %34 : vector<1x128xi1> to vector<1x128xi1>
    %36 = vector.broadcast %35 : vector<1x128xi1> to vector<48x128xi1>
    %37 = vector.shape_cast %32 : vector<48x1xf32> to vector<48x1xf32>
    %38 = vector.broadcast %37 : vector<48x1xf32> to vector<48x128xf32>
    %39 = vector.broadcast %cst_20 : f32 to vector<48x128xf32>
    %40 = arith.select %36, %38, %39 : vector<48x128xi1>, vector<48x128xf32>
    %41 = arith.addf %27, %40 : vector<48x128xf32>
    %c2 = arith.constant 2 : index
    %c0_21 = arith.constant 0 : index
    %c0_22 = arith.constant 0 : index
    %42 = vector.load %arg4[%c2, %c0_21, %c0_22] : memref<4x48x5xf32, #tpu.memory_space<vmem>>, vector<1x48x5xf32>
    %43 = vector.shape_cast %42 : vector<1x48x5xf32> to vector<48x5xf32>
    %44 = arith.mulf %11, %43 : vector<48x5xf32>
    %cst_23 = arith.constant dense<0.000000e+00> : vector<48xf32>
    %45 = vector.multi_reduction <add>, %44, %cst_23 [1] : vector<48x5xf32> to vector<48xf32>
    %46 = vector.shape_cast %45 : vector<48xf32> to vector<48x1xf32>
    %c2_i32 = arith.constant 2 : i32
    %47 = vector.broadcast %c2_i32 : i32 to vector<1x128xi32>
    %48 = arith.cmpi eq, %12, %47 : vector<1x128xi32>
    %cst_24 = arith.constant 0.000000e+00 : f32
    %49 = vector.shape_cast %48 : vector<1x128xi1> to vector<1x128xi1>
    %50 = vector.broadcast %49 : vector<1x128xi1> to vector<48x128xi1>
    %51 = vector.shape_cast %46 : vector<48x1xf32> to vector<48x1xf32>
    %52 = vector.broadcast %51 : vector<48x1xf32> to vector<48x128xf32>
    %53 = vector.broadcast %cst_24 : f32 to vector<48x128xf32>
    %54 = arith.select %50, %52, %53 : vector<48x128xi1>, vector<48x128xf32>
    %55 = arith.addf %41, %54 : vector<48x128xf32>
    %c3 = arith.constant 3 : index
    %c0_25 = arith.constant 0 : index
    %c0_26 = arith.constant 0 : index
    %56 = vector.load %arg4[%c3, %c0_25, %c0_26] : memref<4x48x5xf32, #tpu.memory_space<vmem>>, vector<1x48x5xf32>
    %57 = vector.shape_cast %56 : vector<1x48x5xf32> to vector<48x5xf32>
    %58 = arith.mulf %11, %57 : vector<48x5xf32>
    %cst_27 = arith.constant dense<0.000000e+00> : vector<48xf32>
    %59 = vector.multi_reduction <add>, %58, %cst_27 [1] : vector<48x5xf32> to vector<48xf32>
    %60 = vector.shape_cast %59 : vector<48xf32> to vector<48x1xf32>
    %c3_i32 = arith.constant 3 : i32
    %61 = vector.broadcast %c3_i32 : i32 to vector<1x128xi32>
    %62 = arith.cmpi eq, %12, %61 : vector<1x128xi32>
    %cst_28 = arith.constant 0.000000e+00 : f32
    %63 = vector.shape_cast %62 : vector<1x128xi1> to vector<1x128xi1>
    %64 = vector.broadcast %63 : vector<1x128xi1> to vector<48x128xi1>
    %65 = vector.shape_cast %60 : vector<48x1xf32> to vector<48x1xf32>
    %66 = vector.broadcast %65 : vector<48x1xf32> to vector<48x128xf32>
    %67 = vector.broadcast %cst_28 : f32 to vector<48x128xf32>
    %68 = arith.select %64, %66, %67 : vector<48x128xi1>, vector<48x128xf32>
    %69 = arith.addf %55, %68 : vector<48x128xf32>
    %c0_29 = arith.constant 0 : index
    %c0_30 = arith.constant 0 : index
    %70 = vector.load %arg5[%c0_29, %c0_30] : memref<2x48xf32, #tpu.memory_space<vmem>>, vector<2x48xf32>
    %cst_31 = arith.constant dense<0.000000e+00> : vector<2x128xf32>
    %71 = tpu.matmul %70, %69, %cst_31 {dimension_numbers = #tpu.dot_dimension_numbers<[1], [0], [0], [1], [0, 0, 1, 1], [], []>} : vector<2x48xf32>, vector<48x128xf32>, vector<2x128xf32> -> vector<2x128xf32>
    %c0_32 = arith.constant 0 : index
    %c0_33 = arith.constant 0 : index
    %72 = vector.load %arg6[%c0_32, %c0_33] : memref<1x128xf32, #tpu.memory_space<vmem>>, vector<1x128xf32>
    %73 = vector.broadcast %72 : vector<1x128xf32> to vector<2x128xf32>
    %74 = arith.addf %71, %73 : vector<2x128xf32>
    %c0_34 = arith.constant 0 : index
    %c0_35 = arith.constant 0 : index
    %75 = vector.load %arg7[%c0_34, %c0_35] : memref<2x128xf32, #tpu.memory_space<vmem>>, vector<2x128xf32>
    tpu.vector_store %arg7[%c0_34, %c0_35], %74 {strides = array<i32>} : memref<2x128xf32, #tpu.memory_space<vmem>>, vector<2x128xf32>,
    return
  }
  func.func @transform_0(%arg0: i32) -> (i32, i32) {
    %c0_i32 = arith.constant 0 : i32
    %c0_i32_0 = arith.constant 0 : i32
    return %c0_i32, %arg0 : i32, i32
  }
  func.func @transform_1(%arg0: i32) -> (i32, i32) {
    %c0_i32 = arith.constant 0 : i32
    %c0_i32_0 = arith.constant 0 : i32
    %c0_i32_1 = arith.constant 0 : i32
    return %c0_i32, %c0_i32_0 : i32, i32
  }
  func.func @transform_2(%arg0: i32) -> (i32, i32) {
    %c0_i32 = arith.constant 0 : i32
    %c0_i32_0 = arith.constant 0 : i32
    %c0_i32_1 = arith.constant 0 : i32
    return %c0_i32, %c0_i32_0 : i32, i32
  }
  func.func @transform_3(%arg0: i32) -> (i32, i32, i32) {
    %c0_i32 = arith.constant 0 : i32
    %c0_i32_0 = arith.constant 0 : i32
    %c0_i32_1 = arith.constant 0 : i32
    %c0_i32_2 = arith.constant 0 : i32
    return %c0_i32, %c0_i32_0, %c0_i32_1 : i32, i32, i32
  }
  func.func @transform_4(%arg0: i32) -> (i32, i32) {
    %c0_i32 = arith.constant 0 : i32
    %c0_i32_0 = arith.constant 0 : i32
    %c0_i32_1 = arith.constant 0 : i32
    return %c0_i32, %c0_i32_0 : i32, i32
  }
  func.func @transform_5(%arg0: i32) -> (i32, i32) {
    %c0_i32 = arith.constant 0 : i32
    %c0_i32_0 = arith.constant 0 : i32
    %c0_i32_1 = arith.constant 0 : i32
    return %c0_i32, %c0_i32_0 : i32, i32
  }
  func.func @transform_6(%arg0: i32) -> (i32, i32) {
    %c0_i32 = arith.constant 0 : i32
    %c0_i32_0 = arith.constant 0 : i32
    return %arg0, %c0_i32 : i32, i32
  }
}

</mosaic_0001>

<llo_original>
// kernel: sccnet_forward.1
$region0: #{sccnet_forward.1}
  #allocation0 [shape = 'u32[]', space=smem, size = 0x4, offset = 0x4, fixed_abs, tag = 'smem constant byte address 0x4 - core index']
  #allocation1 [shape = 'u32[72,128]{1,0:T(1,128)}', space=vmem, size = 0x9000, scoped, tag = 'internal scratch']
  #allocation2 [shape = 'f32[48,128]{1,0:T(8,128)}', space=vmem, size = 0x6000, scoped, tag = 'scratch operand']
  %s0 = inlined_call_operand.vmem [shape: f32[56,256], index: 0, kind: input, shape index: {}]
  %s1 = inlined_call_operand.vmem [shape: f32[24,56], index: 1, kind: input, shape index: {}]
  %s2 = inlined_call_operand.vmem [shape: f32[128,5], index: 2, kind: input, shape index: {}]
  %s3 = inlined_call_operand.vmem [shape: f32[4,48,5], index: 3, kind: input, shape index: {}]
  %s4 = inlined_call_operand.vmem [shape: f32[2,48], index: 4, kind: input, shape index: {}]
  %s5 = inlined_call_operand.vmem [shape: f32[1,128], index: 5, kind: input, shape index: {}]
  %s6 = inlined_call_operand.hbm [shape: f32[2,128], index: 6, kind: output, shape index: {}]
  %s7 = sld [smem:[#allocation0]]
  $region34: #{sccnet_forward.1} parent=0
    _
  %s9 = ssub.s32 1, %s7
  %s10 = scalar_select 0, %s9, %s7
  $region1: #{sccnet_forward.1} parent=0
    #allocation3 [shape = 'u8[1024]{0}', space=vmem, size = 0x400, scoped, tag = 'output window, operand 0, single buffered']
    #allocation4 [shape = 's32[1]{0}', space=sflag, size = 0x4, scoped, tag = 'scoped memory for sccnet_forward.1']
    %11 = vsyncpa [#allocation4], 0
    // Predicated region
    $region2: #{sccnet_forward.1} parent=1 // pred_check
      _
    $region3: #{sccnet_forward.1} parent=1 // pred_check_branch
      %13 = sbr.rel (0) target = $region5
    $region4: #{sccnet_forward.1} parent=1 // pred_region
      _
    $region5: #{sccnet_forward.1} parent=1 // pred_fallthru
      _
    // Predicated region
    $region6: #{sccnet_forward.1} parent=1 // pred_check
      _
    $region7: #{sccnet_forward.1} parent=1 // pred_check_branch
      %15 = sbr.rel (0) target = $region9
    $region8: #{sccnet_forward.1} parent=1 // pred_region
      _
    $region9: #{sccnet_forward.1} parent=1 // pred_fallthru
      _
    // Predicated region
    $region10: #{sccnet_forward.1} parent=1 // pred_check
      _
    $region11: #{sccnet_forward.1} parent=1 // pred_check_branch
      %17 = sbr.rel (0) target = $region13
    $region12: #{sccnet_forward.1} parent=1 // pred_region
      _
    $region13: #{sccnet_forward.1} parent=1 // pred_fallthru
      _
    // Predicated region
    $region14: #{sccnet_forward.1} parent=1 // pred_check
      _
    $region15: #{sccnet_forward.1} parent=1 // pred_check_branch
      %19 = sbr.rel (0) target = $region17
    $region16: #{sccnet_forward.1} parent=1 // pred_region
      _
    $region17: #{sccnet_forward.1} parent=1 // pred_fallthru
      _
    // Predicated region
    $region18: #{sccnet_forward.1} parent=1 // pred_check
      _
    $region19: #{sccnet_forward.1} parent=1 // pred_check_branch
      %21 = sbr.rel (0) target = $region21
    $region20: #{sccnet_forward.1} parent=1 // pred_region
      _
    $region21: #{sccnet_forward.1} parent=1 // pred_fallthru
      _
    // Predicated region
    $region22: #{sccnet_forward.1} parent=1 // pred_check
      _
    $region23: #{sccnet_forward.1} parent=1 // pred_check_branch
      %23 = sbr.rel (0) target = $region25
    $region24: #{sccnet_forward.1} parent=1 // pred_region
      _
    $region25: #{sccnet_forward.1} parent=1 // pred_fallthru
      _
    %v24 = vld [vmem:[%s0] sm:$0xff]
    %v25 = vld [vmem:[%s0 + $0x8] sm:$0xff]
    %v26 = vld [vmem:[%s0 + $0x10] sm:$0xff]
    %v27 = vld [vmem:[%s0 + $0x18] sm:$0xff]
    %v28 = vld [vmem:[%s0 + $0x20] sm:$0xff]
    %v29 = vld [vmem:[%s0 + $0x28] sm:$0xff]
    %v30 = vld [vmem:[%s0 + $0x30] sm:$0xff]
    %v31 = vld [vmem:[%s0 + $0x38] sm:$0xff]
    %v32 = vld [vmem:[%s0 + $0x40] sm:$0xff]
    %v33 = vld [vmem:[%s0 + $0x48] sm:$0xff]
    %v34 = vld [vmem:[%s0 + $0x50] sm:$0xff]
    %v35 = vld [vmem:[%s0 + $0x58] sm:$0xff]
    %v36 = vld [vmem:[%s0 + $0x60] sm:$0xff]
    %v37 = vld [vmem:[%s0 + $0x68] sm:$0xff]
    %v38 = vld [vmem:[%s1] sm:$0xff]
    %v39 = vld [vmem:[%s1 + $0x8] sm:$0xff]
    %v40 = vld [vmem:[%s1 + $0x10] sm:$0xff]
    %vm41 = vcmask 457728
    %v43 = vsel %vm41, %v38, 0
    %v46 = vsel %vm41, %v39, 0
    %v49 = vsel %vm41, %v40, 0
    %51 = vmatpush.msra.mxu0 0.0
    %52 = vmatpush.msra.mxu0 0.0
    %53 = vmatpush.msra.mxu0 0.0
    %54 = vmatpush.msra.mxu0 0.0
    %55 = vmatpush.msra.mxu0 0.0
    %56 = vmatpush.msra.mxu0 0.0
    %57 = vmatpush.msra.mxu0 0.0
    %58 = vmatpush.msra.mxu0 0.0
    %59 = vmatpush.msra.mxu0 0.0
    %60 = vmatpush.msra.mxu0 %v36
    %61 = vmatpush.msra.mxu0 %v34
    %62 = vmatpush.msra.mxu0 %v32
    %63 = vmatpush.msra.mxu0 %v30
    %64 = vmatpush.msra.mxu0 %v28
    %65 = vmatpush.msra.mxu0 %v26
    %66 = vmatpush.msra.mxu0 %v24
    %67 = vmatmul.f32.gmra.mxu0 %v43
    %v68 = vpop.f32.mrf.mxu0
    %v69 = vadd.f32 0.0, %v68
    %70 = vmatmul.f32.gmra.mxu0 %v46
    %v71 = vpop.f32.mrf.mxu0
    %v72 = vadd.f32 0.0, %v71
    %73 = vmatmul.f32.gmra.mxu0 %v49
    %v74 = vpop.f32.mrf.mxu0
    %v75 = vadd.f32 0.0, %v74
    %76 = vdwg.mxu0
    %77 = vmatpush.msra.mxu0 0.0
    %78 = vmatpush.msra.mxu0 0.0
    %79 = vmatpush.msra.mxu0 0.0
    %80 = vmatpush.msra.mxu0 0.0
    %81 = vmatpush.msra.mxu0 0.0
    %82 = vmatpush.msra.mxu0 0.0
    %83 = vmatpush.msra.mxu0 0.0
    %84 = vmatpush.msra.mxu0 0.0
    %85 = vmatpush.msra.mxu0 0.0
    %86 = vmatpush.msra.mxu0 %v37
    %87 = vmatpush.msra.mxu0 %v35
    %88 = vmatpush.msra.mxu0 %v33
    %89 = vmatpush.msra.mxu0 %v31
    %90 = vmatpush.msra.mxu0 %v29
    %91 = vmatpush.msra.mxu0 %v27
    %92 = vmatpush.msra.mxu0 %v25
    %93 = vmatmul.f32.gmra.mxu0 %v43
    %v94 = vpop.f32.mrf.mxu0
    %v95 = vadd.f32 0.0, %v94
    %96 = vmatmul.f32.gmra.mxu0 %v46
    %v97 = vpop.f32.mrf.mxu0
    %v98 = vadd.f32 0.0, %v97
    %99 = vmatmul.f32.gmra.mxu0 %v49
    %v100 = vpop.f32.mrf.mxu0
    %v101 = vadd.f32 0.0, %v100
    %102 = vdwg.mxu0
    %v103 = vmul.f32 %v69, %v69
    %v104 = vmul.f32 %v95, %v95
    %v105 = vmul.f32 %v72, %v72
    %v106 = vmul.f32 %v98, %v98
    %v107 = vmul.f32 %v75, %v75
    %v108 = vmul.f32 %v101, %v101
    %109 = vst [vmem:[#allocation2] sm:$0xff] %v103
    %110 = vst [vmem:[#allocation2 + $0x8] sm:$0xff] %v105
    %111 = vst [vmem:[#allocation2 + $0x10] sm:$0xff] %v107
    %112 = vst [vmem:[#allocation2 + $0x18] sm:$0xff] %v104
    %113 = vst [vmem:[#allocation2 + $0x20] sm:$0xff] %v106
    %114 = vst [vmem:[#allocation2 + $0x28] sm:$0xff] %v108
    %v115 = vld [vmem:[#allocation2] sm:$0xff]
    %v116 = vld [vmem:[#allocation2 + $0x8] sm:$0xff]
    %v117 = vld [vmem:[#allocation2 + $0x10] sm:$0xff]
    %v118 = vld [vmem:[#allocation2 + $0x18] sm:$0xff]
    %v119 = vld [vmem:[#allocation2 + $0x20] sm:$0xff]
    %v120 = vld [vmem:[#allocation2 + $0x28] sm:$0xff]
    %v121 = vld [vmem:[%s2] sm:$0xff]
    %v122 = vld [vmem:[%s2 + $0x8] sm:$0xff]
    %v123 = vld [vmem:[%s2 + $0x10] sm:$0xff]
    %v124 = vld [vmem:[%s2 + $0x18] sm:$0xff]
    %v125 = vld [vmem:[%s2 + $0x20] sm:$0xff]
    %v126 = vld [vmem:[%s2 + $0x28] sm:$0xff]
    %v127 = vld [vmem:[%s2 + $0x30] sm:$0xff]
    %v128 = vld [vmem:[%s2 + $0x38] sm:$0xff]
    %v129 = vld [vmem:[%s2 + $0x40] sm:$0xff]
    %v130 = vld [vmem:[%s2 + $0x48] sm:$0xff]
    %v131 = vld [vmem:[%s2 + $0x50] sm:$0xff]
    %v132 = vld [vmem:[%s2 + $0x58] sm:$0xff]
    %v133 = vld [vmem:[%s2 + $0x60] sm:$0xff]
    %v134 = vld [vmem:[%s2 + $0x68] sm:$0xff]
    %v135 = vld [vmem:[%s2 + $0x70] sm:$0xff]
    %v136 = vld [vmem:[%s2 + $0x78] sm:$0xff]
    %137 = vmatpush.msra.mxu0 %v136
    %138 = vmatpush.msra.mxu0 %v135
    %139 = vmatpush.msra.mxu0 %v134
    %140 = vmatpush.msra.mxu0 %v133
    %141 = vmatpush.msra.mxu0 %v132
    %142 = vmatpush.msra.mxu0 %v131
    %143 = vmatpush.msra.mxu0 %v130
    %144 = vmatpush.msra.mxu0 %v129
    %145 = vmatpush.msra.mxu0 %v128
    %146 = vmatpush.msra.mxu0 %v127
    %147 = vmatpush.msra.mxu0 %v126
    %148 = vmatpush.msra.mxu0 %v125
    %149 = vmatpush.msra.mxu0 %v124
    %150 = vmatpush.msra.mxu0 %v123
    %151 = vmatpush.msra.mxu0 %v122
    %152 = vmatpush.msra.mxu0 %v121
    %153 = vmatmul.f32.gmra.mxu0 %v115
    %v154 = vpop.f32.mrf.mxu0
    %v155 = vadd.f32 0.0, %v154
    %156 = vmatmul.f32.gmra.mxu0 %v116
    %v157 = vpop.f32.mrf.mxu0
    %v158 = vadd.f32 0.0, %v157
    %159 = vmatmul.f32.gmra.mxu0 %v117
    %v160 = vpop.f32.mrf.mxu0
    %v161 = vadd.f32 0.0, %v160
    %162 = vmatmul.f32.gmra.mxu0 %v118
    %v163 = vpop.f32.mrf.mxu0
    %v164 = vadd.f32 0.0, %v163
    %165 = vmatmul.f32.gmra.mxu0 %v119
    %v166 = vpop.f32.mrf.mxu0
    %v167 = vadd.f32 0.0, %v166
    %168 = vmatmul.f32.gmra.mxu0 %v120
    %v169 = vpop.f32.mrf.mxu0
    %v170 = vadd.f32 0.0, %v169
    %171 = vdwg.mxu0
    %v172 = vlog2.pop %v155
    %v173 = vmul.f32 %v172, 0.6931472
    %v174 = vlog2.pop %v158
    %v175 = vmul.f32 %v174, 0.6931472
    %v176 = vlog2.pop %v161
    %v177 = vmul.f32 %v176, 0.6931472
    %v178 = vlog2.pop %v164
    %v179 = vmul.f32 %v178, 0.6931472
    %v180 = vlog2.pop %v167
    %v181 = vmul.f32 %v180, 0.6931472
    %v182 = vlog2.pop %v170
    %v183 = vmul.f32 %v182, 0.6931472
    %v184 = vlaneseq
    %v185 = vand.u32 %v184, 127
    %v186 = vld [vmem:[%s3] sm:$0xff]
    %v187 = vld [vmem:[%s3 + $0x8] sm:$0xff]
    %v188 = vld [vmem:[%s3 + $0x10] sm:$0xff]
    %v189 = vld [vmem:[%s3 + $0x18] sm:$0xff]
    %v190 = vld [vmem:[%s3 + $0x20] sm:$0xff]
    %v191 = vld [vmem:[%s3 + $0x28] sm:$0xff]
    %v192 = vmul.f32 %v173, %v186
    %v193 = vmul.f32 %v175, %v187
    %v194 = vmul.f32 %v177, %v188
    %v195 = vmul.f32 %v179, %v189
    %v196 = vmul.f32 %v181, %v190
    %v197 = vmul.f32 %v183, %v191
    %vm198 = vcmask 39936
    %v199 = vsel %vm198, %v192, 0.0
    %200 = vadd.xlane.f32.xlu0 %v199
    %v201 = vpop.xlane.xlu0 %200
    %v202 = vsel %vm198, %v193, 0.0
    %203 = vadd.xlane.f32.xlu0 %v202
    %v204 = vpop.xlane.xlu0 %203
    %v205 = vsel %vm198, %v194, 0.0
    %206 = vadd.xlane.f32.xlu0 %v205
    %v207 = vpop.xlane.xlu0 %206
    %v208 = vsel %vm198, %v195, 0.0
    %209 = vadd.xlane.f32.xlu0 %v208
    %v210 = vpop.xlane.xlu0 %209
    %v211 = vsel %vm198, %v196, 0.0
    %212 = vadd.xlane.f32.xlu0 %v211
    %v213 = vpop.xlane.xlu0 %212
    %v214 = vsel %vm198, %v197, 0.0
    %215 = vadd.xlane.f32.xlu0 %v214
    %v216 = vpop.xlane.xlu0 %215
    %vm217 = vcmp.eq.s32.totalorder %v185, 0
    %v218 = vsel %vm217, 1, 0
    %vm219 = vcmp.eq.s32.totalorder %v218, 1
    %v220 = vsel %vm219, %v201, 0.0
    %v221 = vsel %vm219, %v204, 0.0
    %v222 = vsel %vm219, %v207, 0.0
    %v223 = vsel %vm219, %v210, 0.0
    %v224 = vsel %vm219, %v213, 0.0
    %v225 = vsel %vm219, %v216, 0.0
    %v226 = vadd.f32 %v220, 0.0
    %v227 = vadd.f32 %v221, 0.0
    %v228 = vadd.f32 %v222, 0.0
    %v229 = vadd.f32 %v223, 0.0
    %v230 = vadd.f32 %v224, 0.0
    %v231 = vadd.f32 %v225, 0.0
    %s232 = scalar_lea.vmem %s3, 48
    %v233 = vld [vmem:[%s232] sm:$0xff]
    %v234 = vld [vmem:[%s232 + $0x8] sm:$0xff]
    %v235 = vld [vmem:[%s232 + $0x10] sm:$0xff]
    %v236 = vld [vmem:[%s232 + $0x18] sm:$0xff]
    %v237 = vld [vmem:[%s232 + $0x20] sm:$0xff]
    %v238 = vld [vmem:[%s232 + $0x28] sm:$0xff]
    %v239 = vmul.f32 %v173, %v233
    %v240 = vmul.f32 %v175, %v234
    %v241 = vmul.f32 %v177, %v235
    %v242 = vmul.f32 %v179, %v236
    %v243 = vmul.f32 %v181, %v237
    %v244 = vmul.f32 %v183, %v238
    %v245 = vsel %vm198, %v239, 0.0
    %246 = vadd.xlane.f32.xlu0 %v245
    %v247 = vpop.xlane.xlu0 %246
    %v248 = vsel %vm198, %v240, 0.0
    %249 = vadd.xlane.f32.xlu0 %v248
    %v250 = vpop.xlane.xlu0 %249
    %v251 = vsel %vm198, %v241, 0.0
    %252 = vadd.xlane.f32.xlu0 %v251
    %v253 = vpop.xlane.xlu0 %252
    %v254 = vsel %vm198, %v242, 0.0
    %255 = vadd.xlane.f32.xlu0 %v254
    %v256 = vpop.xlane.xlu0 %255
    %v257 = vsel %vm198, %v243, 0.0
    %258 = vadd.xlane.f32.xlu0 %v257
    %v259 = vpop.xlane.xlu0 %258
    %v260 = vsel %vm198, %v244, 0.0
    %261 = vadd.xlane.f32.xlu0 %v260
    %v262 = vpop.xlane.xlu0 %261
    %vm263 = vcmp.eq.s32.totalorder %v185, 1
    %v264 = vsel %vm263, 1, 0
    %vm265 = vcmp.eq.s32.totalorder %v264, 1
    %v266 = vsel %vm265, %v247, 0.0
    %v267 = vsel %vm265, %v250, 0.0
    %v268 = vsel %vm265, %v253, 0.0
    %v269 = vsel %vm265, %v256, 0.0
    %v270 = vsel %vm265, %v259, 0.0
    %v271 = vsel %vm265, %v262, 0.0
    %v272 = vadd.f32 %v226, %v266
    %v273 = vadd.f32 %v227, %v267
    %v274 = vadd.f32 %v228, %v268
    %v275 = vadd.f32 %v229, %v269
    %v276 = vadd.f32 %v230, %v270
    %v277 = vadd.f32 %v231, %v271
    %s278 = scalar_lea.vmem %s3, 96
    %v279 = vld [vmem:[%s278] sm:$0xff]
    %v280 = vld [vmem:[%s278 + $0x8] sm:$0xff]
    %v281 = vld [vmem:[%s278 + $0x10] sm:$0xff]
    %v282 = vld [vmem:[%s278 + $0x18] sm:$0xff]
    %v283 = vld [vmem:[%s278 + $0x20] sm:$0xff]
    %v284 = vld [vmem:[%s278 + $0x28] sm:$0xff]
    %v285 = vmul.f32 %v173, %v279
    %v286 = vmul.f32 %v175, %v280
    %v287 = vmul.f32 %v177, %v281
    %v288 = vmul.f32 %v179, %v282
    %v289 = vmul.f32 %v181, %v283
    %v290 = vmul.f32 %v183, %v284
    %v291 = vsel %vm198, %v285, 0.0
    %292 = vadd.xlane.f32.xlu0 %v291
    %v293 = vpop.xlane.xlu0 %292
    %v294 = vsel %vm198, %v286, 0.0
    %295 = vadd.xlane.f32.xlu0 %v294
    %v296 = vpop.xlane.xlu0 %295
    %v297 = vsel %vm198, %v287, 0.0
    %298 = vadd.xlane.f32.xlu0 %v297
    %v299 = vpop.xlane.xlu0 %298
    %v300 = vsel %vm198, %v288, 0.0
    %301 = vadd.xlane.f32.xlu0 %v300
    %v302 = vpop.xlane.xlu0 %301
    %v303 = vsel %vm198, %v289, 0.0
    %304 = vadd.xlane.f32.xlu0 %v303
    %v305 = vpop.xlane.xlu0 %304
    %v306 = vsel %vm198, %v290, 0.0
    %307 = vadd.xlane.f32.xlu0 %v306
    %v308 = vpop.xlane.xlu0 %307
    %vm309 = vcmp.eq.s32.totalorder %v185, 2
    %v310 = vsel %vm309, 1, 0
    %vm311 = vcmp.eq.s32.totalorder %v310, 1
    %v312 = vsel %vm311, %v293, 0.0
    %v313 = vsel %vm311, %v296, 0.0
    %v314 = vsel %vm311, %v299, 0.0
    %v315 = vsel %vm311, %v302, 0.0
    %v316 = vsel %vm311, %v305, 0.0
    %v317 = vsel %vm311, %v308, 0.0
    %v318 = vadd.f32 %v272, %v312
    %v319 = vadd.f32 %v273, %v313
    %v320 = vadd.f32 %v274, %v314
    %v321 = vadd.f32 %v275, %v315
    %v322 = vadd.f32 %v276, %v316
    %v323 = vadd.f32 %v277, %v317
    %s324 = scalar_lea.vmem %s3, 144
    %v325 = vld [vmem:[%s324] sm:$0xff]
    %v326 = vld [vmem:[%s324 + $0x8] sm:$0xff]
    %v327 = vld [vmem:[%s324 + $0x10] sm:$0xff]
    %v328 = vld [vmem:[%s324 + $0x18] sm:$0xff]
    %v329 = vld [vmem:[%s324 + $0x20] sm:$0xff]
    %v330 = vld [vmem:[%s324 + $0x28] sm:$0xff]
    %v331 = vmul.f32 %v173, %v325
    %v332 = vmul.f32 %v175, %v326
    %v333 = vmul.f32 %v177, %v327
    %v334 = vmul.f32 %v179, %v328
    %v335 = vmul.f32 %v181, %v329
    %v336 = vmul.f32 %v183, %v330
    %v337 = vsel %vm198, %v331, 0.0
    %338 = vadd.xlane.f32.xlu0 %v337
    %v339 = vpop.xlane.xlu0 %338
    %v340 = vsel %vm198, %v332, 0.0
    %341 = vadd.xlane.f32.xlu0 %v340
    %v342 = vpop.xlane.xlu0 %341
    %v343 = vsel %vm198, %v333, 0.0
    %344 = vadd.xlane.f32.xlu0 %v343
    %v345 = vpop.xlane.xlu0 %344
    %v346 = vsel %vm198, %v334, 0.0
    %347 = vadd.xlane.f32.xlu0 %v346
    %v348 = vpop.xlane.xlu0 %347
    %v349 = vsel %vm198, %v335, 0.0
    %350 = vadd.xlane.f32.xlu0 %v349
    %v351 = vpop.xlane.xlu0 %350
    %v352 = vsel %vm198, %v336, 0.0
    %353 = vadd.xlane.f32.xlu0 %v352
    %v354 = vpop.xlane.xlu0 %353
    %vm355 = vcmp.eq.s32.totalorder %v185, 3
    %v356 = vsel %vm355, 1, 0
    %vm357 = vcmp.eq.s32.totalorder %v356, 1
    %v358 = vsel %vm357, %v339, 0.0
    %v359 = vsel %vm357, %v342, 0.0
    %v360 = vsel %vm357, %v345, 0.0
    %v361 = vsel %vm357, %v348, 0.0
    %v362 = vsel %vm357, %v351, 0.0
    %v363 = vsel %vm357, %v354, 0.0
    %v364 = vadd.f32 %v318, %v358
    %v365 = vadd.f32 %v319, %v359
    %v366 = vadd.f32 %v320, %v360
    %v367 = vadd.f32 %v321, %v361
    %v368 = vadd.f32 %v322, %v362
    %v369 = vadd.f32 %v323, %v363
    %v370 = vld [vmem:[%s4] sm:$0x3]
    %v371 = vld [vmem:[%s5] sm:$0x1]
    %v373 = vperm.slane %v371, 0
    %vm375 = vcmask 392192
    %v377 = vsel %vm375, %v370, 0
    %379 = vmatpush.msra.mxu0 0.0
    %380 = vmatpush.msra.mxu0 0.0
    %381 = vmatpush.msra.mxu0 0.0
    %382 = vmatpush.msra.mxu0 0.0
    %383 = vmatpush.msra.mxu0 0.0
    %384 = vmatpush.msra.mxu0 0.0
    %385 = vmatpush.msra.mxu0 0.0
    %386 = vmatpush.msra.mxu0 0.0
    %387 = vmatpush.msra.mxu0 0.0
    %388 = vmatpush.msra.mxu0 0.0
    %389 = vmatpush.msra.mxu0 %v369
    %390 = vmatpush.msra.mxu0 %v368
    %391 = vmatpush.msra.mxu0 %v367
    %392 = vmatpush.msra.mxu0 %v366
    %393 = vmatpush.msra.mxu0 %v365
    %394 = vmatpush.msra.mxu0 %v364
    %395 = vmatmul.f32.gmra.mxu0 %v377
    %v396 = vpop.f32.mrf.mxu0
    %v397 = vadd.f32 %v373, %v396
    %398 = vdwg.mxu0
    %399 = vst [vmem:[#allocation3] sm:$0x3] %v397
    // Predicated region
    $region26: #{sccnet_forward.1} parent=1 // pred_check
      _
    $region27: #{sccnet_forward.1} parent=1 // pred_check_branch
      %401 = sbr.rel (0) target = $region29
    $region28: #{sccnet_forward.1} parent=1 // pred_region
      %403 = vsyncadd [#allocation4], 0
      %s405 = sshll.u32 [#allocation3], 4
      %s406 = int_to_ptr.vmem [resolvable:$true] %s405
      %s407 = sshll.u32 %s6, 4
      %s408 = int_to_ptr.hbm [resolvable:$true] %s407
      %410 = dma.vmem_to_hbm [thread:$0]  %s406, 32, %s408, [#allocation4]
    $region29: #{sccnet_forward.1} parent=1 // pred_fallthru
      _
    // Predicated region
    $region30: #{sccnet_forward.1} parent=1 // pred_check
      _
    $region31: #{sccnet_forward.1} parent=1 // pred_check_branch
      %412 = sbr.rel (0) target = $region33
    $region32: #{sccnet_forward.1} parent=1 // pred_region
      %414 = dma.done [#allocation4], 32
    $region33: #{sccnet_forward.1} parent=1 // pred_fallthru
      _
    %415 = vsyncpa [#allocation4], 1

</llo_original>
